<compile_context>
chip_gen: v7x
topology: tpu7x:2x2x1
jax: 0.10.0
libtpu: 0.0.40
codegen_flags: <defaults>
</compile_context>

<pallas_src>
import jax
import jax.numpy as jnp
from jax.experimental import pallas as pl
from jax.experimental.pallas import tpu as pltpu

BN_EPS = 1e-5


def prepare_beta(beta_weight):
    """One-time transpose of the native nn.Linear weight (V, K) -> lane-dense (K, V).

    Do this once at weight-load time, NOT per forward call."""
    return jnp.transpose(jnp.asarray(beta_weight))


def _bn_normalize(logits):
    # BatchNorm1d(affine=False), training semantics: per-feature batch mean and
    # biased variance over the batch axis.  Columns are independent, so this is
    # exact per vocab tile.
    mean = jnp.mean(logits, axis=0, keepdims=True)
    centered = logits - mean
    var = jnp.mean(centered * centered, axis=0, keepdims=True)
    return centered * jax.lax.rsqrt(var + BN_EPS)


def _decoder_kernel_single(x_ref, w_ref, o_ref):
    # Single-vocab-tile fast path: Linear -> BN -> softmax fully fused, no
    # scratch staging and no multi-step grid.
    logits = jnp.dot(x_ref[...], w_ref[...], preferred_element_type=jnp.float32)
    normed = _bn_normalize(logits)
    m = jnp.max(normed, axis=1, keepdims=True)
    e = jnp.exp(normed - m)
    denom = jnp.sum(e, axis=1, keepdims=True)
    o_ref[...] = (e / denom).astype(o_ref.dtype)


def _decoder_kernel_tiled(x_ref, w_ref, o_ref, z_ref, m_ref, l_ref):
    # Grid (2, n_v).
    #   pass p==0: Linear + BN per vocab tile, stash normalized logits in the
    #              persistent z scratch, accumulate online softmax stats.
    #   pass p==1: exp + exact normalization per tile, streamed out lane-dense.
    p = pl.program_id(0)
    j = pl.program_id(1)

    @pl.when(jnp.logical_and(p == 0, j == 0))
    def _init():
        m_ref[...] = jnp.full(m_ref.shape, -jnp.inf, m_ref.dtype)
        l_ref[...] = jnp.zeros(l_ref.shape, l_ref.dtype)

    @pl.when(p == 0)
    def _pass0():
        # Lane-dense (K, block_v) weight tile, native MXU (K, N) orientation.
        logits = jnp.dot(x_ref[...], w_ref[...], preferred_element_type=jnp.float32)
        normed = _bn_normalize(logits)                        # (B, block_v) f32
        z_ref[j] = normed                                     # persistent scratch

        # Online softmax statistics (running row max / running sum of exp);
        # reductions/exp land on XLU/EUP slots that are otherwise idle.
        tile_max = jnp.max(normed, axis=1, keepdims=True)     # (B, 1)
        m_prev = m_ref[...]
        m_new = jnp.maximum(m_prev, tile_max)
        alpha = jnp.exp(m_prev - m_new)                       # exp(-inf)=0 at init
        l_ref[...] = l_ref[...] * alpha + jnp.sum(
            jnp.exp(normed - m_new), axis=1, keepdims=True)
        m_ref[...] = m_new

    @pl.when(p == 1)
    def _pass1():
        # Exact normalization: reciprocal of only (B,1) values, then scale.
        inv_l = 1.0 / l_ref[...]
        o_ref[...] = (jnp.exp(z_ref[j] - m_ref[...]) * inv_l).astype(o_ref.dtype)


def _pick_block_v(vocab, target=4096):
    if vocab <= target:
        return vocab
    assert vocab % 128 == 0, "vocab_size must be a multiple of 128 for tiling"
    best = 128
    for cand in range(128, target + 1, 128):
        if vocab % cand == 0:
            best = cand
    return best


def decoder_forward(x, beta_weight_t, *, block_v=None, compute_dtype=jnp.float32):
    """ProdLDA decoder forward.

    x             : (B, num_topics)
    beta_weight_t : (num_topics, vocab_size) == beta.weight.T, pre-transposed
                    ONCE via prepare_beta (lane-dense MXU feed, no per-call
                    transpose).
    """
    B, K = x.shape
    K2, V = beta_weight_t.shape
    assert K == K2, (K, K2)

    if block_v is None:
        block_v = _pick_block_v(V)
    assert V % block_v == 0, (V, block_v)
    assert block_v == V or block_v % 128 == 0, block_v
    n_v = V // block_v

    # TODO(synk): dropout is eval-mode identity here; training-mode dropout
    #             would use pltpu.prng_seed / pltpu.prng_random_bits on x.
    # TODO(synk): BatchNorm uses training-mode batch statistics (biased var);
    #             true eval() mode would use running stats passed in as inputs.
    if compute_dtype != jnp.float32:
        # Optional bf16 feed: halves the dominant weight DMA bytes; matmul
        # still accumulates f32 and BN/softmax math stays f32.
        x = x.astype(compute_dtype)
        beta_weight_t = beta_weight_t.astype(compute_dtype)

    wt_bytes = jnp.dtype(beta_weight_t.dtype).itemsize
    x_bytes = jnp.dtype(x.dtype).itemsize
    cost = pl.CostEstimate(
        flops=2 * B * V * K,
        transcendentals=2 * B * V,
        bytes_accessed=V * K * wt_bytes + B * K * x_bytes + B * V * 4,
    )

    if n_v == 1:
        vmem_need = 2 * (K * V * wt_bytes + B * K * x_bytes + 2 * B * V * 4) + (1 << 20)
        return pl.pallas_call(
            _decoder_kernel_single,
            out_shape=jax.ShapeDtypeStruct((B, V), jnp.float32),
            grid_spec=pltpu.PrefetchScalarGridSpec(
                num_scalar_prefetch=0,
                grid=(1,),
                in_specs=[
                    pl.BlockSpec((B, K), lambda i: (0, 0)),
                    pl.BlockSpec((K, V), lambda i: (0, 0)),
                ],
                out_specs=pl.BlockSpec((B, V), lambda i: (0, 0)),
            ),
            compiler_params=pltpu.CompilerParams(
                dimension_semantics=("arbitrary",),
                vmem_limit_bytes=int(min(max(vmem_need, 16 << 20), 128 << 20)),
            ),
            cost_estimate=cost,
        )(x, beta_weight_t)

    # Two-pass grid: pass 0 computes Linear+BN tiles and online softmax stats;
    # pass 1 streams normalized softmax tiles to HBM.  The weight index_map
    # pins pass 1 to the last-fetched tile so no weight DMA is re-issued, and
    # the output index_map stays constant during pass 0 so no garbage block is
    # ever flushed (each output tile is written exactly once, in pass 1).
    def x_map(p, j):
        return (0, 0)

    def w_map(p, j):
        return (0, jnp.where(p == 0, j, n_v - 1))

    def o_map(p, j):
        return (0, jnp.where(p == 0, 0, j))

    # VMEM budget: z scratch (B*V*4) dominates; weight/output tiles double-buffer.
    # NOTE(v7x): keep B*V*4 + buffers under ~48 MiB of the 64 MiB VMEM — shrink
    # B per call (or split the vocab across the two TensorCores) beyond that.
    vmem_need = (B * V * 4                        # z scratch (resident)
                 + 2 * K * block_v * wt_bytes     # weight double-buffer
                 + 2 * B * K * x_bytes            # x
                 + 2 * B * block_v * 4            # output double-buffer
                 + 2 * B * 4                      # m / l stats
                 + (1 << 20))                     # headroom
    vmem_limit = int(min(max(2 * vmem_need, 16 << 20), 128 << 20))

    return pl.pallas_call(
        _decoder_kernel_tiled,
        out_shape=jax.ShapeDtypeStruct((B, V), jnp.float32),
        grid_spec=pltpu.PrefetchScalarGridSpec(
            num_scalar_prefetch=0,
            grid=(2, n_v),
            in_specs=[
                pl.BlockSpec((B, K), x_map),           # tiny, resident
                pl.BlockSpec((K, block_v), w_map),     # pipelined lane-dense weight tile
            ],
            out_specs=pl.BlockSpec((B, block_v), o_map),  # lane-dense streamed output
            scratch_shapes=[
                pltpu.VMEM((n_v, B, block_v), jnp.float32),  # BN-normalized logits
                pltpu.VMEM((B, 1), jnp.float32),             # running row max
                pltpu.VMEM((B, 1), jnp.float32),             # running sum of exp
            ],
        ),
        compiler_params=pltpu.CompilerParams(
            dimension_semantics=("arbitrary", "arbitrary"),
            vmem_limit_bytes=vmem_limit,
        ),
        cost_estimate=cost,
    )(x, beta_weight_t)


def decoder_reference(x, beta_weight):
    logits = x @ beta_weight.T
    mean = jnp.mean(logits, axis=0, keepdims=True)
    var = jnp.mean((logits - mean) ** 2, axis=0, keepdims=True)
    normed = (logits - mean) / jnp.sqrt(var + BN_EPS)
    return jax.nn.softmax(normed, axis=1)


if __name__ == "__main__":
    # Small shapes consistent with the module: batch=8 docs, num_topics=16,
    # vocab_size=256; block_v=128 exercises the multi-tile (two-pass) path.
    B, NUM_TOPICS, VOCAB = 8, 16, 256

    key = jax.random.PRNGKey(0)
    kx, kw = jax.random.split(key)
    x = jax.random.normal(kx, (B, NUM_TOPICS), dtype=jnp.float32)
    # Native nn.Linear layout (vocab_size, num_topics).
    beta_w = jax.random.normal(kw, (VOCAB, NUM_TOPICS), dtype=jnp.float32) * 0.05
    # One-time lane-dense transpose, outside the hot path.
    beta_w_t = jax.block_until_ready(prepare_beta(beta_w))

    ref = decoder_reference(x, beta_w)

    # Tiled (two-pass, online-softmax) path.
    out = jax.block_until_ready(decoder_forward(x, beta_w_t, block_v=128))
    assert out.shape == (B, VOCAB)
    assert jnp.allclose(jnp.sum(out, axis=1), 1.0, atol=1e-3)
    assert jnp.allclose(out, ref, atol=1e-3, rtol=1e-3)

    # Single-tile fully-fused fast path (n_v == 1).
    out1 = jax.block_until_ready(decoder_forward(x, beta_w_t, block_v=VOCAB))
    assert jnp.allclose(jnp.sum(out1, axis=1), 1.0, atol=1e-3)
    assert jnp.allclose(out1, ref, atol=1e-3, rtol=1e-3)

    print("KERNEL_OK")
</pallas_src>

<mosaic_0001>
module attributes {stable_mosaic.version = 11 : i64} {
  func.func @_decoder_kernel_tiled(%arg0: i32, %arg1: i32, %arg2: memref<8x16xf32, #tpu.memory_space<vmem>>, %arg3: memref<16x128xf32, #tpu.memory_space<vmem>>, %arg4: memref<8x128xf32, #tpu.memory_space<vmem>>, %arg5: memref<2x8x128xf32, #tpu.memory_space<vmem>>, %arg6: memref<8x1xf32, #tpu.memory_space<vmem>>, %arg7: memref<8x1xf32, #tpu.memory_space<vmem>>) attributes {dimension_semantics = [#tpu.dimension_semantics<arbitrary>, #tpu.dimension_semantics<arbitrary>], iteration_bounds = array<i64: 2, 2>, scalar_prefetch = 0 : i64, scratch_operands = 3 : i64, tpu.core_type = #tpu.core_type<tc>, window_params = [{pipeline_mode = #tpu.pipeline_mode<synchronous>, transform_indices = @transform_0, window_bounds = array<i64: 8, 16>}, {transform_indices = @transform_1, window_bounds = array<i64: 16, 128>}, {transform_indices = @transform_2, window_bounds = array<i64: 8, 128>}]} {
    %c0_i32 = arith.constant 0 : i32
    %0 = arith.cmpi eq, %arg0, %c0_i32 : i32
    %c0_i32_0 = arith.constant 0 : i32
    %1 = arith.cmpi eq, %arg1, %c0_i32_0 : i32
    %2 = arith.andi %0, %1 : i1
    %3 = arith.extui %2 : i1 to i32
    %c0_i32_1 = arith.constant 0 : i32
    %4 = arith.cmpi ne, %3, %c0_i32_1 : i32
    scf.if %4 {
      %cst = arith.constant 0xFF800000 : f32
      %11 = vector.broadcast %cst : f32 to vector<8x1xf32>
      %c0 = arith.constant 0 : index
      %c0_5 = arith.constant 0 : index
      %12 = vector.load %arg6[%c0, %c0_5] : memref<8x1xf32, #tpu.memory_space<vmem>>, vector<8x1xf32>
      tpu.vector_store %arg6[%c0, %c0_5], %11 {strides = array<i32>} : memref<8x1xf32, #tpu.memory_space<vmem>>, vector<8x1xf32>,
      %cst_6 = arith.constant 0.000000e+00 : f32
      %13 = vector.broadcast %cst_6 : f32 to vector<8x1xf32>
      %c0_7 = arith.constant 0 : index
      %c0_8 = arith.constant 0 : index
      %14 = vector.load %arg7[%c0_7, %c0_8] : memref<8x1xf32, #tpu.memory_space<vmem>>, vector<8x1xf32>
      tpu.vector_store %arg7[%c0_7, %c0_8], %13 {strides = array<i32>} : memref<8x1xf32, #tpu.memory_space<vmem>>, vector<8x1xf32>,
    } else {
    }
    %c0_i32_2 = arith.constant 0 : i32
    %5 = arith.cmpi eq, %arg0, %c0_i32_2 : i32
    %6 = arith.extui %5 : i1 to i32
    %c0_i32_3 = arith.constant 0 : i32
    %7 = arith.cmpi ne, %6, %c0_i32_3 : i32
    scf.if %7 {
      %c0 = arith.constant 0 : index
      %c0_5 = arith.constant 0 : index
      %11 = vector.load %arg2[%c0, %c0_5] : memref<8x16xf32, #tpu.memory_space<vmem>>, vector<8x16xf32>
      %c0_6 = arith.constant 0 : index
      %c0_7 = arith.constant 0 : index
      %12 = vector.load %arg3[%c0_6, %c0_7] : memref<16x128xf32, #tpu.memory_space<vmem>>, vector<16x128xf32>
      %cst = arith.constant dense<0.000000e+00> : vector<8x128xf32>
      %13 = tpu.matmul %11, %12, %cst {dimension_numbers = #tpu.dot_dimension_numbers<[1], [0], [0], [1], [0, 0, 1, 1], [], []>} : vector<8x16xf32>, vector<16x128xf32>, vector<8x128xf32> -> vector<8x128xf32>
      %cst_8 = arith.constant dense<0.000000e+00> : vector<128xf32>
      %14 = vector.multi_reduction <add>, %13, %cst_8 [0] : vector<8x128xf32> to vector<128xf32>
      %15 = vector.shape_cast %14 : vector<128xf32> to vector<1x128xf32>
      %cst_9 = arith.constant 8.000000e+00 : f32
      %16 = vector.broadcast %cst_9 : f32 to vector<1x128xf32>
      %17 = arith.divf %15, %16 : vector<1x128xf32>
      %18 = vector.broadcast %17 : vector<1x128xf32> to vector<8x128xf32>
      %19 = arith.subf %13, %18 : vector<8x128xf32>
      %20 = arith.mulf %19, %19 : vector<8x128xf32>
      %cst_10 = arith.constant dense<0.000000e+00> : vector<128xf32>
      %21 = vector.multi_reduction <add>, %20, %cst_10 [0] : vector<8x128xf32> to vector<128xf32>
      %22 = vector.shape_cast %21 : vector<128xf32> to vector<1x128xf32>
      %cst_11 = arith.constant 8.000000e+00 : f32
      %23 = vector.broadcast %cst_11 : f32 to vector<1x128xf32>
      %24 = arith.divf %22, %23 : vector<1x128xf32>
      %cst_12 = arith.constant 9.99999974E-6 : f32
      %25 = vector.broadcast %cst_12 : f32 to vector<1x128xf32>
      %26 = arith.addf %24, %25 : vector<1x128xf32>
      %27 = math.rsqrt %26 : vector<1x128xf32>
      %28 = vector.broadcast %27 : vector<1x128xf32> to vector<8x128xf32>
      %29 = arith.mulf %19, %28 : vector<8x128xf32>
      %30 = arith.index_cast %arg1 : i32 to index
      %c0_13 = arith.constant 0 : index
      %c0_14 = arith.constant 0 : index
      %31 = vector.load %arg5[%30, %c0_13, %c0_14] : memref<2x8x128xf32, #tpu.memory_space<vmem>>, vector<1x8x128xf32>
      %32 = vector.shape_cast %31 : vector<1x8x128xf32> to vector<8x128xf32>
      %33 = vector.shape_cast %29 : vector<8x128xf32> to vector<1x8x128xf32>
      tpu.vector_store %arg5[%30, %c0_13, %c0_14], %33 {strides = array<i32>} : memref<2x8x128xf32, #tpu.memory_space<vmem>>, vector<1x8x128xf32>,
      %cst_15 = arith.constant dense<0xFF800000> : vector<8xf32>
      %34 = vector.multi_reduction <maximumf>, %29, %cst_15 [1] : vector<8x128xf32> to vector<8xf32>
      %35 = vector.shape_cast %34 : vector<8xf32> to vector<8x1xf32>
      %c0_16 = arith.constant 0 : index
      %c0_17 = arith.constant 0 : index
      %36 = vector.load %arg6[%c0_16, %c0_17] : memref<8x1xf32, #tpu.memory_space<vmem>>, vector<8x1xf32>
      %37 = arith.maximumf %36, %35 : vector<8x1xf32>
      %38 = arith.subf %36, %37 : vector<8x1xf32>
      %39 = math.exp %38 : vector<8x1xf32>
      %c0_18 = arith.constant 0 : index
      %c0_19 = arith.constant 0 : index
      %40 = vector.load %arg7[%c0_18, %c0_19] : memref<8x1xf32, #tpu.memory_space<vmem>>, vector<8x1xf32>
      %41 = arith.mulf %40, %39 : vector<8x1xf32>
      %42 = vector.broadcast %37 : vector<8x1xf32> to vector<8x128xf32>
      %43 = arith.subf %29, %42 : vector<8x128xf32>
      %44 = math.exp %43 : vector<8x128xf32>
      %cst_20 = arith.constant dense<0.000000e+00> : vector<8xf32>
      %45 = vector.multi_reduction <add>, %44, %cst_20 [1] : vector<8x128xf32> to vector<8xf32>
      %46 = vector.shape_cast %45 : vector<8xf32> to vector<8x1xf32>
      %47 = arith.addf %41, %46 : vector<8x1xf32>
      %c0_21 = arith.constant 0 : index
      %c0_22 = arith.constant 0 : index
      %48 = vector.load %arg7[%c0_21, %c0_22] : memref<8x1xf32, #tpu.memory_space<vmem>>, vector<8x1xf32>
      tpu.vector_store %arg7[%c0_21, %c0_22], %47 {strides = array<i32>} : memref<8x1xf32, #tpu.memory_space<vmem>>, vector<8x1xf32>,
      %c0_23 = arith.constant 0 : index
      %c0_24 = arith.constant 0 : index
      %49 = vector.load %arg6[%c0_23, %c0_24] : memref<8x1xf32, #tpu.memory_space<vmem>>, vector<8x1xf32>
      tpu.vector_store %arg6[%c0_23, %c0_24], %37 {strides = array<i32>} : memref<8x1xf32, #tpu.memory_space<vmem>>, vector<8x1xf32>,
    } else {
    }
    %c1_i32 = arith.constant 1 : i32
    %8 = arith.cmpi eq, %arg0, %c1_i32 : i32
    %9 = arith.extui %8 : i1 to i32
    %c0_i32_4 = arith.constant 0 : i32
    %10 = arith.cmpi ne, %9, %c0_i32_4 : i32
    scf.if %10 {
      %c0 = arith.constant 0 : index
      %c0_5 = arith.constant 0 : index
      %11 = vector.load %arg7[%c0, %c0_5] : memref<8x1xf32, #tpu.memory_space<vmem>>, vector<8x1xf32>
      %cst = arith.constant 1.000000e+00 : f32
      %12 = vector.broadcast %cst : f32 to vector<8x1xf32>
      %13 = arith.divf %12, %11 : vector<8x1xf32>
      %14 = arith.index_cast %arg1 : i32 to index
      %c0_6 = arith.constant 0 : index
      %c0_7 = arith.constant 0 : index
      %15 = vector.load %arg5[%14, %c0_6, %c0_7] : memref<2x8x128xf32, #tpu.memory_space<vmem>>, vector<1x8x128xf32>
      %16 = vector.shape_cast %15 : vector<1x8x128xf32> to vector<8x128xf32>
      %c0_8 = arith.constant 0 : index
      %c0_9 = arith.constant 0 : index
      %17 = vector.load %arg6[%c0_8, %c0_9] : memref<8x1xf32, #tpu.memory_space<vmem>>, vector<8x1xf32>
      %18 = vector.broadcast %17 : vector<8x1xf32> to vector<8x128xf32>
      %19 = arith.subf %16, %18 : vector<8x128xf32>
      %20 = math.exp %19 : vector<8x128xf32>
      %21 = vector.broadcast %13 : vector<8x1xf32> to vector<8x128xf32>
      %22 = arith.mulf %20, %21 : vector<8x128xf32>
      %c0_10 = arith.constant 0 : index
      %c0_11 = arith.constant 0 : index
      %23 = vector.load %arg4[%c0_10, %c0_11] : memref<8x128xf32, #tpu.memory_space<vmem>>, vector<8x128xf32>
      tpu.vector_store %arg4[%c0_10, %c0_11], %22 {strides = array<i32>} : memref<8x128xf32, #tpu.memory_space<vmem>>, vector<8x128xf32>,
    } else {
    }
    return
  }
  func.func @transform_0(%arg0: i32, %arg1: i32) -> (i32, i32) {
    %c0_i32 = arith.constant 0 : i32
    %c0_i32_0 = arith.constant 0 : i32
    %c0_i32_1 = arith.constant 0 : i32
    return %c0_i32, %c0_i32_0 : i32, i32
  }
  func.func @transform_1(%arg0: i32, %arg1: i32) -> (i32, i32) {
    %c0_i32 = arith.constant 0 : i32
    %0 = arith.cmpi eq, %arg0, %c0_i32 : i32
    %c1_i32 = arith.constant 1 : i32
    %1 = arith.select %0, %arg1, %c1_i32 : i32
    %c0_i32_0 = arith.constant 0 : i32
    %c0_i32_1 = arith.constant 0 : i32
    return %c0_i32_0, %1 : i32, i32
  }
  func.func @transform_2(%arg0: i32, %arg1: i32) -> (i32, i32) {
    %c0_i32 = arith.constant 0 : i32
    %0 = arith.cmpi eq, %arg0, %c0_i32 : i32
    %c0_i32_0 = arith.constant 0 : i32
    %1 = arith.select %0, %c0_i32_0, %arg1 : i32
    %c0_i32_1 = arith.constant 0 : i32
    %c0_i32_2 = arith.constant 0 : i32
    return %c0_i32_1, %1 : i32, i32
  }
}

</mosaic_0001>

<llo_original>
// kernel: tpu_custom_call.1
$region0: #{tpu_custom_call.1}
  #allocation0 [shape = 'u32[]', space=smem, size = 0x4, offset = 0x4, fixed_abs, tag = 'smem constant byte address 0x4 - core index']
  #allocation1 [shape = 'u32[144,128]{1,0:T(1,128)}', space=vmem, size = 0x12000, scoped, tag = 'internal scratch']
  #allocation2 [shape = 'f32[2,8,128]{2,1,0:T(8,128)}', space=vmem, size = 0x2000, scoped, tag = 'scratch operand']
  #allocation3 [shape = 'f32[8,1]{1,0:T(8,128)}', space=vmem, size = 0x1000, scoped, tag = 'scratch operand']
  #allocation4 [shape = 'f32[8,1]{1,0:T(8,128)}', space=vmem, size = 0x1000, scoped, tag = 'scratch operand']
  %s0 = inlined_call_operand.hbm [shape: f32[8,16], index: 0, kind: input, shape index: {}]
  %s1 = inlined_call_operand.hbm [shape: f32[16,256], index: 1, kind: input, shape index: {}]
  %s2 = inlined_call_operand.hbm [shape: f32[8,256], index: 2, kind: output, shape index: {}]
  %s3 = sld [smem:[#allocation0]]
  $region61: #{tpu_custom_call.1} parent=0
    _
  %s5 = ssub.s32 1, %s3
  %s6 = scalar_select 0, %s5, %s3
  $region1: #{tpu_custom_call.1} parent=0
    #allocation5 [shape = 'u8[4096]{0}', space=vmem, size = 0x1000, scoped, tag = 'input window, operand 0, single buffered']
    #allocation6 [shape = 's32[2]{0}', space=sflag, size = 0x8, scoped, tag = 'scoped memory for tpu_custom_call.1']
    #allocation7 [shape = 's32[2]{0}', space=sflag, size = 0x8, scoped, tag = 'scoped memory for tpu_custom_call.1']
    #allocation8 [shape = 'u8[16384]{0}', space=vmem, size = 0x4000, scoped, tag = 'input window, operand 1']
    #allocation9 [shape = 's32[2]{0}', space=sflag, size = 0x8, scoped, tag = 'scoped memory for tpu_custom_call.1']
    #allocation10 [shape = 'u8[8192]{0}', space=vmem, size = 0x2000, scoped, tag = 'output window, operand 0']
    %7 = vsyncpa [#allocation6], 0
    %8 = vsyncpa [#allocation9], 0
    %s9 = scalar_lea.sflag [#allocation9], 1
    %10 = vsyncpa %s9, 0
    %11 = vsyncpa [#allocation7], 0
    %s12 = scalar_lea.sflag [#allocation7], 1
    %13 = vsyncpa %s12, 0
    loop: start=0, step=1, limit=6
    $region2: #{tpu_custom_call.1} parent=1 // loop_pre_header
      _
    $region3: #{tpu_custom_call.1} parent=1 // loop_header
      %s15 = sphi 0, %s19
      %p16 = scmp.ge.s32.totalorder %s15, 6
      %s22 = sphi 0, %s34
      %s23 = sphi 0, %s30
      %s24 = sphi 0, %s22
      %s25 = sphi 0, %s23
      %s26 = sphi 0, %s24
      %s27 = sphi 0, %s25
      %s35 = sphi 0, %s35
      %s37 = sphi 0, %s35
      %s38 = sphi 0, %s37
      %s52 = sphi 0, %s38
      %s62 = sphi 0, %s64
      %s65 = sphi 0, %s62
      %s66 = sphi 0, %s65
      %s82 = sphi 0, %s66
      %s92 = sphi 0, %s94
      %s95 = sphi 0, %s92
      %s96 = sphi 0, %s95
      %s112 = sphi 0, %s96
    $region4: #{tpu_custom_call.1} parent=1 // loop_header_branch
      %18 = sbr.rel (%p16) target = $region8
    $region5: #{tpu_custom_call.1} parent=1 // loop_body
      %s20 = ssub.s32 %s15, 1
      %s21 = ssub.s32 %s15, 2
      %s28 = sadd.s32 1, %s23
      %p29 = scmp.ge.s32.totalorder %s28, 2
      %s30 = scalar_select %p29, 0, %s28
      %s31 = sadd.s32 1, %s22
      %s32 = scalar_select %p29, %s31, %s22
      %p33 = scmp.ge.s32.totalorder %s32, 2
      %s34 = scalar_select %p33, 0, %s32
      %s36 = sadd.s32 %s35, 1
      %p39 = scmp.eq.s32.totalorder %s15, 3
      %p40 = scmp.ne.s32.totalorder %s35, %s37
      %p41 = scmp.eq.s32.totalorder %s15, 0
      %p42 = por %p40, %p41
      %p43 = scmp.ne.s32.totalorder %s35, %s37
      %p44 = scmp.eq.s32.totalorder %s20, 3
      %p45 = por %p43, %p44
      %p46 = scmp.ne.s32.totalorder %s37, %s38
      %p47 = scmp.eq.s32.totalorder %s20, 0
      %p48 = por %p46, %p47
      %p49 = scmp.ne.s32.totalorder %s37, %s38
      %p50 = scmp.eq.s32.totalorder %s21, 3
      %p51 = por %p49, %p50
      %p53 = scmp.ne.s32.totalorder %s38, %s52
      %p54 = scmp.eq.s32.totalorder %s21, 0
      %p55 = por %p53, %p54
      %p56 = scmp.eq.s32.totalorder %s22, 0
      %s57 = scalar_select %p56, %s23, 1
      %p58 = scmp.eq.s32.totalorder %s34, 0
      %s59 = scalar_select %p58, %s30, 1
      %s60 = ssub.s32 %s57, %s59
      %p61 = scmp.eq.s32.totalorder %s60, 0
      %s63 = sadd.s32 %s62, 1
      %s64 = scalar_select %p61, %s62, %s63
      %p67 = pneg %p61
      %p68 = scmp.eq.s32.totalorder %s15, 3
      %p69 = por %p67, %p68
      %p70 = scmp.ne.s32.totalorder %s62, %s65
      %p71 = scmp.eq.s32.totalorder %s15, 0
      %p72 = por %p70, %p71
      %p73 = scmp.ne.s32.totalorder %s62, %s65
      %p74 = scmp.eq.s32.totalorder %s20, 3
      %p75 = por %p73, %p74
      %p76 = scmp.ne.s32.totalorder %s65, %s66
      %p77 = scmp.eq.s32.totalorder %s20, 0
      %p78 = por %p76, %p77
      %p79 = scmp.ne.s32.totalorder %s65, %s66
      %p80 = scmp.eq.s32.totalorder %s21, 3
      %p81 = por %p79, %p80
      %p83 = scmp.ne.s32.totalorder %s66, %s82
      %p84 = scmp.eq.s32.totalorder %s21, 0
      %p85 = por %p83, %p84
      %p86 = scmp.eq.s32.totalorder %s22, 0
      %s87 = scalar_select %p86, 0, %s23
      %p88 = scmp.eq.s32.totalorder %s34, 0
      %s89 = scalar_select %p88, 0, %s30
      %s90 = ssub.s32 %s87, %s89
      %p91 = scmp.eq.s32.totalorder %s90, 0
      %s93 = sadd.s32 %s92, 1
      %s94 = scalar_select %p91, %s92, %s93
      %p97 = pneg %p91
      %p98 = scmp.eq.s32.totalorder %s15, 3
      %p99 = por %p97, %p98
      %p100 = scmp.ne.s32.totalorder %s92, %s95
      %p101 = scmp.eq.s32.totalorder %s15, 0
      %p102 = por %p100, %p101
      %p103 = scmp.ne.s32.totalorder %s92, %s95
      %p104 = scmp.eq.s32.totalorder %s20, 3
      %p105 = por %p103, %p104
      %p106 = scmp.ne.s32.totalorder %s95, %s96
      %p107 = scmp.eq.s32.totalorder %s20, 0
      %p108 = por %p106, %p107
      %p109 = scmp.ne.s32.totalorder %s95, %s96
      %p110 = scmp.eq.s32.totalorder %s21, 3
      %p111 = por %p109, %p110
      %p113 = scmp.ne.s32.totalorder %s96, %s112
      %p114 = scmp.eq.s32.totalorder %s21, 0
      %p115 = por %p113, %p114
      %p116 = scmp.le.s32.totalorder 1, %s15
      %p117 = scmp.lt.s32.totalorder %s15, 5
      %p118 = pnand %p116, %p117
      %p119 = pneg %p118
      // Predicated region
      $region9: #{tpu_custom_call.1} parent=5 // pred_check
        _
      $region10: #{tpu_custom_call.1} parent=5 // pred_check_branch
        %121 = sbr.rel (%p118) target = $region12
      $region11: #{tpu_custom_call.1} parent=5 // pred_region
        %s122 = ssub.s32 %s15, 1
        // Predicated region
        $region13: #{tpu_custom_call.1} parent=11 // pred_check
          %p123 = pneg %p48
        $region14: #{tpu_custom_call.1} parent=11 // pred_check_branch
          %125 = sbr.rel (%p123) target = $region16
        $region15: #{tpu_custom_call.1} parent=11 // pred_region
          %s127 = ssub.s32 128, 128
          %128 = vsyncadd [#allocation6], %s127
          %s130 = sshll.u32 [#allocation5], 4
          %s131 = int_to_ptr.vmem [resolvable:$true] %s130
          %133 = dma.hbm_to_vmem [thread:$0]  %s0, 128, %s131, [#allocation6]
        $region16: #{tpu_custom_call.1} parent=11 // pred_fallthru
          _
      $region12: #{tpu_custom_call.1} parent=5 // pred_fallthru
        _
      %p134 = scmp.lt.s32.totalorder %s15, 4
      // Predicated region
      $region17: #{tpu_custom_call.1} parent=5 // pred_check
        %p135 = pneg %p134
      $region18: #{tpu_custom_call.1} parent=5 // pred_check_branch
        %137 = sbr.rel (%p135) target = $region20
      $region19: #{tpu_custom_call.1} parent=5 // pred_region
        // Predicated region
        $region21: #{tpu_custom_call.1} parent=19 // pred_check
          %p138 = pneg %p72
        $region22: #{tpu_custom_call.1} parent=19 // pred_check_branch
          %140 = sbr.rel (%p138) target = $region24
        $region23: #{tpu_custom_call.1} parent=19 // pred_region
          %s141 = sand.u32 %s62, 1
          %s142 = scalar_lea.sflag [#allocation9], %s141
          %s143 = sand.u32 %s62, 1
          %s144 = smul.addr %s143, 16
          %s145 = scalar_lea.vmem [#allocation8], %s144
          %p146 = scmp.eq.s32.totalorder %s22, 0
          %s147 = scalar_select %p146, %s23, 1
          %s149 = ssub.s32 256, 256
          %150 = vsyncadd %s142, %s149
          %s151 = smul.addr %s147, 128
          %s152 = scalar_lea.hbm %s1, %s151
          %s153 = sshll.u32 %s145, 4
          %s154 = int_to_ptr.vmem [resolvable:$true] %s153
          %159 = dma.hbm_to_vmem [thread:$0]  %s152, 256, %s154, %s142, 256, 128, 8
        $region24: #{tpu_custom_call.1} parent=19 // pred_fallthru
          _
      $region20: #{tpu_custom_call.1} parent=5 // pred_fallthru
        _
      %p160 = scmp.le.s32.totalorder 1, %s15
      %p161 = scmp.lt.s32.totalorder %s15, 5
      %p162 = pnand %p160, %p161
      %p163 = pneg %p162
      // Predicated region
      $region25: #{tpu_custom_call.1} parent=5 // pred_check
        _
      $region26: #{tpu_custom_call.1} parent=5 // pred_check_branch
        %165 = sbr.rel (%p162) target = $region28
      $region27: #{tpu_custom_call.1} parent=5 // pred_region
        %s166 = ssub.s32 %s15, 1
        // Predicated region
        $region29: #{tpu_custom_call.1} parent=27 // pred_check
          %p167 = pneg %p48
        $region30: #{tpu_custom_call.1} parent=27 // pred_check_branch
          %169 = sbr.rel (%p167) target = $region32
        $region31: #{tpu_custom_call.1} parent=27 // pred_region
          %170 = dma.done [#allocation6], 128
        $region32: #{tpu_custom_call.1} parent=27 // pred_fallthru
          _
        %s171 = sand.u32 %s65, 1
        %s172 = scalar_lea.sflag [#allocation9], %s171
        %s173 = sand.u32 %s65, 1
        %s174 = smul.addr %s173, 16
        %s175 = scalar_lea.vmem [#allocation8], %s174
        // Predicated region
        $region33: #{tpu_custom_call.1} parent=27 // pred_check
          %p176 = pneg %p78
        $region34: #{tpu_custom_call.1} parent=27 // pred_check_branch
          %178 = sbr.rel (%p176) target = $region36
        $region35: #{tpu_custom_call.1} parent=27 // pred_region
          %179 = dma.done %s172, 256
        $region36: #{tpu_custom_call.1} parent=27 // pred_fallthru
          _
        %p180 = pneg %p48
        %p181 = pneg %p45
        %s182 = sand.u32 %s65, 1
        %s183 = scalar_lea.sflag [#allocation9], %s182
        %s184 = sand.u32 %s65, 1
        %s185 = smul.addr %s184, 16
        %s186 = scalar_lea.vmem [#allocation8], %s185
        %p187 = pneg %p78
        %p188 = pneg %p75
        %p189 = pneg %p108
        %p190 = pneg %p105
        %s191 = sand.u32 %s95, 1
        %s192 = scalar_lea.sflag [#allocation7], %s191
        %s193 = sand.u32 %s95, 1
        %s194 = smul.addr %s193, 8
        %s195 = scalar_lea.vmem [#allocation10], %s194
        %p196 = scmp.eq.s32.totalorder %s24, 0
        %s197 = scalar_select %p196, %s25, 1
        %p198 = scmp.eq.s32.totalorder %s24, 0
        %s199 = scalar_select %p198, 0, %s25
        %p200 = scmp.eq.s32.totalorder %s24, 0
        %p201 = scmp.eq.s32.totalorder %s25, 0
        %p202 = pnand %p200, %p201
        %p203 = pneg %p202
        // Predicated region
        $region37: #{tpu_custom_call.1} parent=27 // pred_check
          _
        $region38: #{tpu_custom_call.1} parent=27 // pred_check_branch
          %205 = sbr.rel (%p202) target = $region40
        $region39: #{tpu_custom_call.1} parent=27 // pred_region
          %vm206 = vcmask 7168
          %207 = vst.msk [vmem:[#allocation3] sm:$0xff] %vm206, -inf
          %208 = vst.msk [vmem:[#allocation4] sm:$0xff] %vm206, 0.0
        $region40: #{tpu_custom_call.1} parent=27 // pred_fallthru
          _
        // Predicated region
        $region41: #{tpu_custom_call.1} parent=27 // pred_check
          %p209 = pneg %p200
        $region42: #{tpu_custom_call.1} parent=27 // pred_check_branch
          %211 = sbr.rel (%p209) target = $region44
        $region43: #{tpu_custom_call.1} parent=27 // pred_region
          %v212 = vld [vmem:[#allocation5] sm:$0xff]
          %v213 = vld [vmem:[%s175] sm:$0xff]
          %v214 = vld [vmem:[%s175 + $0x8] sm:$0xff]
          %vm215 = vcmask 130048
          %v217 = vsel %vm215, %v212, 0
          %219 = vmatprep.subr.mxu0 0.0
          %220 = vmatpush1.msra.mxu0 %v213
          %221 = vmatprep.subr.mxu0 0.0
          %222 = vmatpush1.msra.mxu0 %v214
          %223 = vmatprep.subr.mxu0 0.0
          %224 = vmatpush1.msra.mxu0 0.0
          %225 = vmatprep.subr.mxu0 0.0
          %226 = vmatpush1.msra.mxu0 0.0
          %227 = vmatprep.subr.mxu0 0.0
          %228 = vmatpush1.msra.mxu0 0.0
          %229 = vmatprep.subr.mxu0 0.0
          %230 = vmatpush1.msra.mxu0 0.0
          %231 = vmatprep.subr.mxu0 0.0
          %232 = vmatpush1.msra.mxu0 0.0
          %233 = vmatprep.subr.mxu0 0.0
          %234 = vmatpush1.msra.mxu0 0.0
          %235 = vmatprep.subr.mxu0 0.0
          %236 = vmatpush1.msra.mxu0 0.0
          %237 = vmatprep.subr.mxu0 0.0
          %238 = vmatpush1.msra.mxu0 0.0
          %239 = vmatprep.subr.mxu0 0.0
          %240 = vmatpush1.msra.mxu0 0.0
          %241 = vmatprep.subr.mxu0 0.0
          %242 = vmatpush1.msra.mxu0 0.0
          %243 = vmatprep.subr.mxu0 0.0
          %244 = vmatpush1.msra.mxu0 0.0
          %245 = vmatprep.subr.mxu0 0.0
          %246 = vmatpush1.msra.mxu0 0.0
          %247 = vmatprep.subr.mxu0 0.0
          %248 = vmatpush1.msra.mxu0 0.0
          %249 = vmatprep.subr.mxu0 0.0
          %250 = vmatpush1.msra.mxu0 0.0
          %251 = vmatprep.subr.mxu0 0.0
          %252 = vmatpush1.msra.mxu0 0.0
          %253 = vmatprep.subr.mxu0 0.0
          %254 = vmatpush1.msra.mxu0 0.0
          %255 = vmatprep.subr.mxu0 0.0
          %256 = vmatpush1.msra.mxu0 0.0
          %257 = vmatprep.subr.mxu0 0.0
          %258 = vmatpush1.msra.mxu0 0.0
          %259 = vmatprep.subr.mxu0 0.0
          %260 = vmatpush1.msra.mxu0 0.0
          %261 = vmatprep.subr.mxu0 0.0
          %262 = vmatpush1.msra.mxu0 0.0
          %263 = vmatprep.subr.mxu0 0.0
          %264 = vmatpush1.msra.mxu0 0.0
          %265 = vmatprep.subr.mxu0 0.0
          %266 = vmatpush1.msra.mxu0 0.0
          %267 = vmatprep.subr.mxu0 0.0
          %268 = vmatpush1.msra.mxu0 0.0
          %269 = vmatprep.subr.mxu0 0.0
          %270 = vmatpush1.msra.mxu0 0.0
          %271 = vmatprep.subr.mxu0 0.0
          %272 = vmatpush1.msra.mxu0 0.0
          %273 = vmatprep.subr.mxu0 0.0
          %274 = vmatpush1.msra.mxu0 0.0
          %275 = vmatprep.subr.mxu0 0.0
          %276 = vmatpush1.msra.mxu0 0.0
          %277 = vmatprep.subr.mxu0 0.0
          %278 = vmatpush1.msra.mxu0 0.0
          %279 = vmatprep.subr.mxu0 0.0
          %280 = vmatpush1.msra.mxu0 0.0
          %281 = vmatprep.subr.mxu0 0.0
          %282 = vmatpush1.msra.mxu0 0.0
          %283 = vmatprep.mubr.f32.mxu0 0.0
          %284 = vmatmul.mubr.f32.gmra.mrb[0].mxu0 %v217
          %v285 = vpop.f32.mrb[0].mxu0
          %v286 = vadd.f32 0.0, %v285
          %v287 = vpop.f32.mrb[0].mxu0
          %288 = vdwg.mxu0
          %v289 = vrot.slane %v286, 4
          %v290 = vadd.f32 %v286, %v289
          %v291 = vrot.slane %v290, 2
          %v292 = vadd.f32 %v290, %v291
          %v293 = vrot.slane %v292, 1
          %v294 = vadd.f32 %v292, %v293
          %v295 = vrcp.pop 8.0
          %v296 = vmul.f32 %v294, %v295
          %v297 = vsub.f32 %v286, %v296
          %v298 = vmul.f32 %v297, %v297
          %v299 = vrot.slane %v298, 4
          %v300 = vadd.f32 %v298, %v299
          %v301 = vrot.slane %v300, 2
          %v302 = vadd.f32 %v300, %v301
          %v303 = vrot.slane %v302, 1
          %v304 = vadd.f32 %v302, %v303
          %v305 = vmul.f32 %v304, %v295
          %v306 = vadd.f32 %v305, 1e-05
          %v307 = vrsqrt.pop %v306
          %v308 = vmul.f32 %v297, %v307
          %s309 = smul.u32 %s25, 8
          %s310 = scalar_lea.vmem [#allocation2], %s309
          %311 = vst [vmem:[%s310] sm:$0xff] %v308
          %312 = vmax.xlane.f32.xlu0 %v308
          %v313 = vpop.xlane.xlu0 %312
          %v314 = vld [vmem:[#allocation3] sm:$0xff]
          %v315 = vmax.f32 %v314, %v313
          %v316 = vsub.f32 %v314, %v315
          %v317 = vmul.f32 %v316, 1.442695
          %v318 = vpow.pop %v317
          %v319 = vld [vmem:[#allocation4] sm:$0xff]
          %v320 = vmul.f32 %v319, %v318
          %322 = vset.pattern.permute.xlu0 0
          %323 = vperm.xlu0 %322, %v315
          %v324 = vpop.permute.xlu0 %323
          %v326 = vsub.f32 %v308, %v324
          %v327 = vmul.f32 %v326, 1.442695
          %v328 = vpow.pop %v327
          %329 = vadd.xlane.f32.xlu0 %v328
          %v330 = vpop.xlane.xlu0 %329
          %v331 = vadd.f32 %v320, %v330
          %vm332 = vcmask 7168
          %333 = vst.msk [vmem:[#allocation4] sm:$0xff] %vm332, %v331
          %334 = vst.msk [vmem:[#allocation3] sm:$0xff] %vm332, %v315
        $region44: #{tpu_custom_call.1} parent=27 // pred_fallthru
          _
        %p335 = scmp.eq.s32.totalorder %s24, 1
        // Predicated region
        $region45: #{tpu_custom_call.1} parent=27 // pred_check
          %p336 = pneg %p335
        $region46: #{tpu_custom_call.1} parent=27 // pred_check_branch
          %338 = sbr.rel (%p336) target = $region48
        $region47: #{tpu_custom_call.1} parent=27 // pred_region
          %v339 = vld [vmem:[#allocation4] sm:$0xff]
          %v340 = vrcp.pop %v339
          %v341 = vmul.f32 1.0, %v340
          %s342 = smul.u32 %s25, 8
          %s343 = scalar_lea.vmem [#allocation2], %s342
          %v344 = vld [vmem:[%s343] sm:$0xff]
          %v345 = vld [vmem:[#allocation3] sm:$0xff]
          %347 = vset.pattern.permute.xlu0 0
          %348 = vperm.xlu0 %347, %v345
          %v349 = vpop.permute.xlu0 %348
          %v351 = vsub.f32 %v344, %v349
          %v352 = vmul.f32 %v351, 1.442695
          %v353 = vpow.pop %v352
          %355 = vset.pattern.permute.xlu0 0
          %356 = vperm.xlu0 %355, %v341
          %v357 = vpop.permute.xlu0 %356
          %v359 = vmul.f32 %v353, %v357
          %360 = vst [vmem:[%s195] sm:$0xff] %v359
        $region48: #{tpu_custom_call.1} parent=27 // pred_fallthru
          _
        %s361 = sand.u32 %s95, 1
        %s362 = scalar_lea.sflag [#allocation7], %s361
        %s363 = sand.u32 %s95, 1
        %s364 = smul.addr %s363, 8
        %s365 = scalar_lea.vmem [#allocation10], %s364
        // Predicated region
        $region49: #{tpu_custom_call.1} parent=27 // pred_check
          %p366 = pneg %p105
        $region50: #{tpu_custom_call.1} parent=27 // pred_check_branch
          %368 = sbr.rel (%p366) target = $region52
        $region51: #{tpu_custom_call.1} parent=27 // pred_region
          %p369 = scmp.eq.s32.totalorder %s24, 0
          %s370 = scalar_select %p369, 0, %s25
          %s372 = ssub.s32 128, 128
          %373 = vsyncadd %s362, %s372
          %s374 = smul.addr %s370, 128
          %s375 = scalar_lea.hbm %s2, %s374
          %s377 = sshll.u32 %s365, 4
          %s378 = int_to_ptr.vmem [resolvable:$true] %s377
          %380 = dma.vmem_to_hbm [thread:$0]  %s378, 128, %s375, %s362
        $region52: #{tpu_custom_call.1} parent=27 // pred_fallthru
          _
      $region28: #{tpu_custom_call.1} parent=5 // pred_fallthru
        _
      %p381 = scmp.le.s32.totalorder 2, %s15
      // Predicated region
      $region53: #{tpu_custom_call.1} parent=5 // pred_check
        %p382 = pneg %p381
      $region54: #{tpu_custom_call.1} parent=5 // pred_check_branch
        %384 = sbr.rel (%p382) target = $region56
      $region55: #{tpu_custom_call.1} parent=5 // pred_region
        %s385 = ssub.s32 %s15, 2
        // Predicated region
        $region57: #{tpu_custom_call.1} parent=55 // pred_check
          %p386 = pneg %p111
        $region58: #{tpu_custom_call.1} parent=55 // pred_check_branch
          %388 = sbr.rel (%p386) target = $region60
        $region59: #{tpu_custom_call.1} parent=55 // pred_region
          %s389 = sand.u32 %s96, 1
          %s390 = scalar_lea.sflag [#allocation7], %s389
          %s391 = sand.u32 %s96, 1
          %s392 = smul.addr %s391, 8
          %s393 = scalar_lea.vmem [#allocation10], %s392
          %394 = dma.done %s390, 128
        $region60: #{tpu_custom_call.1} parent=55 // pred_fallthru
          _
      $region56: #{tpu_custom_call.1} parent=5 // pred_fallthru
        _
    $region6: #{tpu_custom_call.1} parent=1 // loop_footer
      %s19 = sadd.s32 1, %s15
    $region7: #{tpu_custom_call.1} parent=1 // loop_footer_branch
      %14 = sbr.rel target = $region3
    $region8: #{tpu_custom_call.1} parent=1 // loop_exit
      _
    %395 = vsyncpa [#allocation6], 1
    %s396 = scalar_lea.sflag [#allocation6], 1
    %397 = vsyncpa %s396, 1
    %398 = vsyncpa [#allocation9], 1
    %s399 = scalar_lea.sflag [#allocation9], 1
    %400 = vsyncpa %s399, 1
    %401 = vsyncpa [#allocation7], 1
    %s402 = scalar_lea.sflag [#allocation7], 1
    %403 = vsyncpa %s402, 1

</llo_original>
